<compile_context>
chip_gen: v6e
topology: v6e:2x2x1
jax: 0.10.0
libtpu: 0.0.40
codegen_flags: <defaults>
</compile_context>

<pallas_src>
import functools

import jax
import jax.numpy as jnp
from jax.experimental import pallas as pl
from jax.experimental.pallas import tpu as pltpu


def actor_kernel(x_ref, w1_ref, b1_ref, w2_ref, b2_ref, wh_ref, bh_ref,
                 out_ref):
    # fc1 + relu  (accumulate in f32 regardless of operand dtype)
    h1 = jnp.dot(x_ref[...], w1_ref[...], preferred_element_type=jnp.float32)
    h1 = jnp.maximum(h1 + b1_ref[...], 0.0)

    # fc2 + relu
    h2 = jnp.dot(h1.astype(w2_ref.dtype), w2_ref[...],
                 preferred_element_type=jnp.float32)
    h2 = jnp.maximum(h2 + b2_ref[...], 0.0)

    # fused heads: columns [0, act_dim) -> mean, [act_dim, 2*act_dim) -> log_std
    heads = jnp.dot(h2.astype(wh_ref.dtype), wh_ref[...],
                    preferred_element_type=jnp.float32)
    heads = heads + bh_ref[...]

    act_dim = out_ref.shape[-1] // 2
    # tanh goes to the EUP slot (essentially free); select per lane instead of
    # column-slicing so everything stays a single lane-aligned vreg op.
    transformed = 3.5 * jnp.tanh(heads) - 1.5  # folded affine rescale to [-5, 2]
    col = jax.lax.broadcasted_iota(jnp.int32, heads.shape, 1)
    out = jnp.where(col >= act_dim, transformed, heads)
    out_ref[...] = out.astype(out_ref.dtype)


@functools.partial(jax.jit, static_argnames=("tile_b", "compute_dtype"))
def actor_forward(x, params, *, tile_b=512, compute_dtype=jnp.float32):
    """x: (B, obs) float32.  params: dict (see init_params).

    Returns (mean, log_std), both (B, act_dim) float32.
    """
    w1, b1, w2, b2 = params["w1"], params["b1"], params["w2"], params["b2"]
    wm, bm, wls, bls = params["wm"], params["bm"], params["wls"], params["bls"]

    act_dim = wm.shape[1]
    B, obs = x.shape
    l1 = w1.shape[1]
    l2 = w2.shape[1]

    # Fuse the two head projections into one matmul (lane-denser output).
    wh = jnp.concatenate([wm, wls], axis=1)       # (l2, 2*act_dim)
    bh = jnp.concatenate([bm, bls], axis=1)       # (1, 2*act_dim)

    # Matmul operands in compute_dtype (bf16 halves DMA bytes on v6e/v7x);
    # biases stay f32 since all elementwise math runs on f32 accumulators.
    x_c = x.astype(compute_dtype)
    w1_c = w1.astype(compute_dtype)
    w2_c = w2.astype(compute_dtype)
    wh_c = wh.astype(compute_dtype)

    # Batch tile: multiple of 8 when tiling, or the full batch if it is small.
    if B <= tile_b:
        tb = B
    else:
        tb = tile_b
    grid = (pl.cdiv(B, tb),)

    resident = lambda shape: pl.BlockSpec(shape, lambda i: (0, 0))

    out = pl.pallas_call(
        actor_kernel,
        out_shape=jax.ShapeDtypeStruct((B, 2 * act_dim), jnp.float32),
        grid=grid,
        in_specs=[
            pl.BlockSpec((tb, obs), lambda i: (i, 0)),   # x: streamed over batch
            resident((obs, l1)),                         # W1 (VMEM-resident)
            resident((1, l1)),                           # b1
            resident((l1, l2)),                          # W2
            resident((1, l2)),                           # b2
            resident((l2, 2 * act_dim)),                 # fused head weights
            resident((1, 2 * act_dim)),                  # fused head biases
        ],
        out_specs=pl.BlockSpec((tb, 2 * act_dim), lambda i: (i, 0)),
        compiler_params=pltpu.CompilerParams(
            dimension_semantics=("parallel",)),
    )(x_c, w1_c, b1, w2_c, b2, wh_c, bh)

    mean = out[:, :act_dim]
    log_std = out[:, act_dim:]
    return mean, log_std


def init_params(key, obs_size, l1, l2, act_dim):
    """Deterministic init matching nn.Linear shapes (stored transposed as (in, out))."""
    ks = jax.random.split(key, 8)

    def lin(kw, kb, fan_in, fan_out):
        bound = 1.0 / jnp.sqrt(float(fan_in))
        w = jax.random.uniform(kw, (fan_in, fan_out), jnp.float32, -bound, bound)
        b = jax.random.uniform(kb, (1, fan_out), jnp.float32, -bound, bound)
        return w, b

    w1, b1 = lin(ks[0], ks[1], obs_size, l1)
    w2, b2 = lin(ks[2], ks[3], l1, l2)
    wm, bm = lin(ks[4], ks[5], l2, act_dim)
    wls, bls = lin(ks[6], ks[7], l2, act_dim)
    return dict(w1=w1, b1=b1, w2=w2, b2=b2, wm=wm, bm=bm, wls=wls, bls=bls)


def _reference(x, p):
    h1 = jnp.maximum(x @ p["w1"] + p["b1"], 0.0)
    h2 = jnp.maximum(h1 @ p["w2"] + p["b2"], 0.0)
    mean = h2 @ p["wm"] + p["bm"]
    ls = jnp.tanh(h2 @ p["wls"] + p["bls"])
    ls = -5.0 + 0.5 * (2.0 - (-5.0)) * (ls + 1.0)
    return mean, ls


if __name__ == "__main__":
    key = jax.random.PRNGKey(0)
    k_x, k_p, k_big = jax.random.split(key, 3)

    batch = 2
    observation_size = 16
    layer_1_size = 32
    layer_2_size = 32
    action_dim = 4  # np.prod(action_space.shape)

    x = jax.random.normal(k_x, (batch, observation_size), jnp.float32)
    params = init_params(k_p, observation_size, layer_1_size, layer_2_size,
                         action_dim)

    # ---- small batch, f32 compute: tight check -----------------------------
    mean, log_std = actor_forward(x, params, compute_dtype=jnp.float32)
    mean = jax.block_until_ready(mean)
    log_std = jax.block_until_ready(log_std)
    ref_mean, ref_log_std = _reference(x, params)
    assert jnp.allclose(mean, ref_mean, atol=1e-5, rtol=1e-5)
    assert jnp.allclose(log_std, ref_log_std, atol=1e-5, rtol=1e-5)

    # ---- large batch exercising the batch grid (incl. a partial last tile) --
    xb = jax.random.normal(k_big, (1000, observation_size), jnp.float32)
    mean_b, log_std_b = actor_forward(xb, params, tile_b=512,
                                      compute_dtype=jnp.float32)
    mean_b = jax.block_until_ready(mean_b)
    log_std_b = jax.block_until_ready(log_std_b)
    ref_mean_b, ref_log_std_b = _reference(xb, params)
    assert jnp.allclose(mean_b, ref_mean_b, atol=1e-4, rtol=1e-4)
    assert jnp.allclose(log_std_b, ref_log_std_b, atol=1e-4, rtol=1e-4)

    # ---- bf16 matmul operands (v6e/v7x fast path): loose check --------------
    mean_h, log_std_h = actor_forward(x, params, compute_dtype=jnp.bfloat16)
    mean_h = jax.block_until_ready(mean_h)
    log_std_h = jax.block_until_ready(log_std_h)
    assert jnp.allclose(mean_h, ref_mean, atol=5e-2, rtol=5e-2)
    assert jnp.allclose(log_std_h, ref_log_std, atol=5e-2, rtol=5e-2)

    # TODO(synk): get_action's Normal.rsample / log_prob sampling path is
    # stochastic glue and not implemented in the kernel.
    print("KERNEL_OK")
</pallas_src>

<mosaic_0001>
module attributes {stable_mosaic.version = 11 : i64} {
  func.func @actor_kernel(%arg0: i32, %arg1: memref<2x16xf32, #tpu.memory_space<vmem>>, %arg2: memref<16x32xf32, #tpu.memory_space<vmem>>, %arg3: memref<1x32xf32, #tpu.memory_space<vmem>>, %arg4: memref<32x32xf32, #tpu.memory_space<vmem>>, %arg5: memref<1x32xf32, #tpu.memory_space<vmem>>, %arg6: memref<32x8xf32, #tpu.memory_space<vmem>>, %arg7: memref<1x8xf32, #tpu.memory_space<vmem>>, %arg8: memref<2x8xf32, #tpu.memory_space<vmem>>) attributes {dimension_semantics = [#tpu.dimension_semantics<parallel>], iteration_bounds = array<i64: 1>, scalar_prefetch = 0 : i64, scratch_operands = 0 : i64, tpu.core_type = #tpu.core_type<tc>, window_params = [{transform_indices = @transform_0, window_bounds = array<i64: 2, 16>}, {pipeline_mode = #tpu.pipeline_mode<synchronous>, transform_indices = @transform_1, window_bounds = array<i64: 16, 32>}, {pipeline_mode = #tpu.pipeline_mode<synchronous>, transform_indices = @transform_2, window_bounds = array<i64: 1, 32>}, {pipeline_mode = #tpu.pipeline_mode<synchronous>, transform_indices = @transform_3, window_bounds = array<i64: 32, 32>}, {pipeline_mode = #tpu.pipeline_mode<synchronous>, transform_indices = @transform_4, window_bounds = array<i64: 1, 32>}, {pipeline_mode = #tpu.pipeline_mode<synchronous>, transform_indices = @transform_5, window_bounds = array<i64: 32, 8>}, {pipeline_mode = #tpu.pipeline_mode<synchronous>, transform_indices = @transform_6, window_bounds = array<i64: 1, 8>}, {transform_indices = @transform_7, window_bounds = array<i64: 2, 8>}]} {
    %c0 = arith.constant 0 : index
    %c0_0 = arith.constant 0 : index
    %0 = vector.load %arg1[%c0, %c0_0] : memref<2x16xf32, #tpu.memory_space<vmem>>, vector<2x16xf32>
    %c0_1 = arith.constant 0 : index
    %c0_2 = arith.constant 0 : index
    %1 = vector.load %arg2[%c0_1, %c0_2] : memref<16x32xf32, #tpu.memory_space<vmem>>, vector<16x32xf32>
    %cst = arith.constant dense<0.000000e+00> : vector<2x32xf32>
    %2 = tpu.matmul %0, %1, %cst {dimension_numbers = #tpu.dot_dimension_numbers<[1], [0], [0], [1], [0, 0, 1, 1], [], []>} : vector<2x16xf32>, vector<16x32xf32>, vector<2x32xf32> -> vector<2x32xf32>
    %c0_3 = arith.constant 0 : index
    %c0_4 = arith.constant 0 : index
    %3 = vector.load %arg3[%c0_3, %c0_4] : memref<1x32xf32, #tpu.memory_space<vmem>>, vector<1x32xf32>
    %4 = vector.broadcast %3 : vector<1x32xf32> to vector<2x32xf32>
    %5 = arith.addf %2, %4 : vector<2x32xf32>
    %cst_5 = arith.constant 0.000000e+00 : f32
    %6 = vector.broadcast %cst_5 : f32 to vector<2x32xf32>
    %7 = arith.maximumf %5, %6 : vector<2x32xf32>
    %c0_6 = arith.constant 0 : index
    %c0_7 = arith.constant 0 : index
    %8 = vector.load %arg4[%c0_6, %c0_7] : memref<32x32xf32, #tpu.memory_space<vmem>>, vector<32x32xf32>
    %cst_8 = arith.constant dense<0.000000e+00> : vector<2x32xf32>
    %9 = tpu.matmul %7, %8, %cst_8 {dimension_numbers = #tpu.dot_dimension_numbers<[1], [0], [0], [1], [0, 0, 1, 1], [], []>} : vector<2x32xf32>, vector<32x32xf32>, vector<2x32xf32> -> vector<2x32xf32>
    %c0_9 = arith.constant 0 : index
    %c0_10 = arith.constant 0 : index
    %10 = vector.load %arg5[%c0_9, %c0_10] : memref<1x32xf32, #tpu.memory_space<vmem>>, vector<1x32xf32>
    %11 = vector.broadcast %10 : vector<1x32xf32> to vector<2x32xf32>
    %12 = arith.addf %9, %11 : vector<2x32xf32>
    %cst_11 = arith.constant 0.000000e+00 : f32
    %13 = vector.broadcast %cst_11 : f32 to vector<2x32xf32>
    %14 = arith.maximumf %12, %13 : vector<2x32xf32>
    %c0_12 = arith.constant 0 : index
    %c0_13 = arith.constant 0 : index
    %15 = vector.load %arg6[%c0_12, %c0_13] : memref<32x8xf32, #tpu.memory_space<vmem>>, vector<32x8xf32>
    %cst_14 = arith.constant dense<0.000000e+00> : vector<2x8xf32>
    %16 = tpu.matmul %14, %15, %cst_14 {dimension_numbers = #tpu.dot_dimension_numbers<[1], [0], [0], [1], [0, 0, 1, 1], [], []>} : vector<2x32xf32>, vector<32x8xf32>, vector<2x8xf32> -> vector<2x8xf32>
    %c0_15 = arith.constant 0 : index
    %c0_16 = arith.constant 0 : index
    %17 = vector.load %arg7[%c0_15, %c0_16] : memref<1x8xf32, #tpu.memory_space<vmem>>, vector<1x8xf32>
    %18 = vector.broadcast %17 : vector<1x8xf32> to vector<2x8xf32>
    %19 = arith.addf %16, %18 : vector<2x8xf32>
    %20 = math.tanh %19 : vector<2x8xf32>
    %cst_17 = arith.constant 3.500000e+00 : f32
    %21 = vector.broadcast %cst_17 : f32 to vector<2x8xf32>
    %22 = arith.mulf %21, %20 : vector<2x8xf32>
    %cst_18 = arith.constant 1.500000e+00 : f32
    %23 = vector.broadcast %cst_18 : f32 to vector<2x8xf32>
    %24 = arith.subf %22, %23 : vector<2x8xf32>
    %25 = tpu.iota {dimensions = array<i32: 1>} : vector<2x8xi32>
    %c4_i32 = arith.constant 4 : i32
    %26 = vector.broadcast %c4_i32 : i32 to vector<2x8xi32>
    %27 = arith.cmpi sge, %25, %26 : vector<2x8xi32>
    %28 = arith.select %27, %24, %19 : vector<2x8xi1>, vector<2x8xf32>
    %c0_19 = arith.constant 0 : index
    %c0_20 = arith.constant 0 : index
    %29 = vector.load %arg8[%c0_19, %c0_20] : memref<2x8xf32, #tpu.memory_space<vmem>>, vector<2x8xf32>
    tpu.vector_store %arg8[%c0_19, %c0_20], %28 {strides = array<i32>} : memref<2x8xf32, #tpu.memory_space<vmem>>, vector<2x8xf32>,
    return
  }
  func.func @transform_0(%arg0: i32) -> (i32, i32) {
    %c0_i32 = arith.constant 0 : i32
    %c0_i32_0 = arith.constant 0 : i32
    return %arg0, %c0_i32 : i32, i32
  }
  func.func @transform_1(%arg0: i32) -> (i32, i32) {
    %c0_i32 = arith.constant 0 : i32
    %c0_i32_0 = arith.constant 0 : i32
    %c0_i32_1 = arith.constant 0 : i32
    return %c0_i32, %c0_i32_0 : i32, i32
  }
  func.func @transform_2(%arg0: i32) -> (i32, i32) {
    %c0_i32 = arith.constant 0 : i32
    %c0_i32_0 = arith.constant 0 : i32
    %c0_i32_1 = arith.constant 0 : i32
    return %c0_i32, %c0_i32_0 : i32, i32
  }
  func.func @transform_3(%arg0: i32) -> (i32, i32) {
    %c0_i32 = arith.constant 0 : i32
    %c0_i32_0 = arith.constant 0 : i32
    %c0_i32_1 = arith.constant 0 : i32
    return %c0_i32, %c0_i32_0 : i32, i32
  }
  func.func @transform_4(%arg0: i32) -> (i32, i32) {
    %c0_i32 = arith.constant 0 : i32
    %c0_i32_0 = arith.constant 0 : i32
    %c0_i32_1 = arith.constant 0 : i32
    return %c0_i32, %c0_i32_0 : i32, i32
  }
  func.func @transform_5(%arg0: i32) -> (i32, i32) {
    %c0_i32 = arith.constant 0 : i32
    %c0_i32_0 = arith.constant 0 : i32
    %c0_i32_1 = arith.constant 0 : i32
    return %c0_i32, %c0_i32_0 : i32, i32
  }
  func.func @transform_6(%arg0: i32) -> (i32, i32) {
    %c0_i32 = arith.constant 0 : i32
    %c0_i32_0 = arith.constant 0 : i32
    %c0_i32_1 = arith.constant 0 : i32
    return %c0_i32, %c0_i32_0 : i32, i32
  }
  func.func @transform_7(%arg0: i32) -> (i32, i32) {
    %c0_i32 = arith.constant 0 : i32
    %c0_i32_0 = arith.constant 0 : i32
    return %arg0, %c0_i32 : i32, i32
  }
}

</mosaic_0001>

<llo_original>
// kernel: actor_forward.1
$region0: #{actor_forward.1}
  #allocation0 [shape = 'u32[]', space=smem, size = 0x4, offset = 0x4, fixed_abs, tag = 'smem constant byte address 0x4 - core index']
  #allocation1 [shape = 'u32[144,128]{1,0:T(1,128)}', space=vmem, size = 0x12000, scoped, tag = 'internal scratch']
  %s0 = inlined_call_operand.vmem [shape: f32[2,16], index: 0, kind: input, shape index: {}]
  %s1 = inlined_call_operand.vmem [shape: f32[16,32], index: 1, kind: input, shape index: {}]
  %s2 = inlined_call_operand.vmem [shape: f32[1,32], index: 2, kind: input, shape index: {}]
  %s3 = inlined_call_operand.vmem [shape: f32[32,32], index: 3, kind: input, shape index: {}]
  %s4 = inlined_call_operand.vmem [shape: f32[1,32], index: 4, kind: input, shape index: {}]
  %s5 = inlined_call_operand.vmem [shape: f32[32,8], index: 5, kind: input, shape index: {}]
  %s6 = inlined_call_operand.vmem [shape: f32[1,8], index: 6, kind: input, shape index: {}]
  %s7 = inlined_call_operand.vmem [shape: f32[2,8], index: 7, kind: output, shape index: {}]
  %s8 = sld [smem:[#allocation0]]
  $region38: #{actor_forward.1} parent=0
    _
  %s10 = ssub.s32 1, %s8
  %s11 = scalar_select 0, %s10, %s8
  // Predicated region
  $region2: #{actor_forward.1} parent=0 // pred_check
    _
  $region3: #{actor_forward.1} parent=0 // pred_check_branch
    %13 = sbr.rel (0) target = $region5
  $region4: #{actor_forward.1} parent=0 // pred_region
    _
  $region5: #{actor_forward.1} parent=0 // pred_fallthru
    _
  // Predicated region
  $region6: #{actor_forward.1} parent=0 // pred_check
    _
  $region7: #{actor_forward.1} parent=0 // pred_check_branch
    %15 = sbr.rel (0) target = $region9
  $region8: #{actor_forward.1} parent=0 // pred_region
    _
  $region9: #{actor_forward.1} parent=0 // pred_fallthru
    _
  // Predicated region
  $region10: #{actor_forward.1} parent=0 // pred_check
    _
  $region11: #{actor_forward.1} parent=0 // pred_check_branch
    %17 = sbr.rel (0) target = $region13
  $region12: #{actor_forward.1} parent=0 // pred_region
    _
  $region13: #{actor_forward.1} parent=0 // pred_fallthru
    _
  // Predicated region
  $region14: #{actor_forward.1} parent=0 // pred_check
    _
  $region15: #{actor_forward.1} parent=0 // pred_check_branch
    %19 = sbr.rel (0) target = $region17
  $region16: #{actor_forward.1} parent=0 // pred_region
    _
  $region17: #{actor_forward.1} parent=0 // pred_fallthru
    _
  // Predicated region
  $region18: #{actor_forward.1} parent=0 // pred_check
    _
  $region19: #{actor_forward.1} parent=0 // pred_check_branch
    %21 = sbr.rel (0) target = $region21
  $region20: #{actor_forward.1} parent=0 // pred_region
    _
  $region21: #{actor_forward.1} parent=0 // pred_fallthru
    _
  // Predicated region
  $region22: #{actor_forward.1} parent=0 // pred_check
    _
  $region23: #{actor_forward.1} parent=0 // pred_check_branch
    %23 = sbr.rel (0) target = $region25
  $region24: #{actor_forward.1} parent=0 // pred_region
    _
  $region25: #{actor_forward.1} parent=0 // pred_fallthru
    _
  // Predicated region
  $region26: #{actor_forward.1} parent=0 // pred_check
    _
  $region27: #{actor_forward.1} parent=0 // pred_check_branch
    %25 = sbr.rel (0) target = $region29
  $region28: #{actor_forward.1} parent=0 // pred_region
    _
  $region29: #{actor_forward.1} parent=0 // pred_fallthru
    _
  %v26 = vld [vmem:[%s0] sm:$0x3]
  %v27 = vld [vmem:[%s1] sm:$0xff]
  %v28 = vld [vmem:[%s1 + $0x8] sm:$0xff]
  %v29 = vld [vmem:[%s2] sm:$0x1]
  %v31 = vlaneseq
  %v32 = vshrl.u32 %v31, 7
  %v33 = vsub.s32 0, %v32
  %v34 = vrot.slane %v29, %v33
  %vm36 = vcmask 130048
  %v38 = vsel %vm36, %v26, 0
  %40 = vmatprep.subr.mxu0 0.0
  %41 = vmatpush1.msra.mxu0 0.0
  %42 = vmatprep.subr.mxu0 0.0
  %43 = vmatpush1.msra.mxu0 0.0
  %44 = vmatprep.subr.mxu0 0.0
  %45 = vmatpush1.msra.mxu0 0.0
  %46 = vmatprep.subr.mxu0 0.0
  %47 = vmatpush1.msra.mxu0 0.0
  %48 = vmatprep.subr.mxu0 0.0
  %49 = vmatpush1.msra.mxu0 0.0
  %50 = vmatprep.subr.mxu0 0.0
  %51 = vmatpush1.msra.mxu0 0.0
  %52 = vmatprep.subr.mxu0 0.0
  %53 = vmatpush1.msra.mxu0 0.0
  %54 = vmatprep.subr.mxu0 0.0
  %55 = vmatpush1.msra.mxu0 0.0
  %56 = vmatprep.subr.mxu0 0.0
  %57 = vmatpush1.msra.mxu0 0.0
  %58 = vmatprep.subr.mxu0 0.0
  %59 = vmatpush1.msra.mxu0 0.0
  %60 = vmatprep.subr.mxu0 0.0
  %61 = vmatpush1.msra.mxu0 0.0
  %62 = vmatprep.subr.mxu0 0.0
  %63 = vmatpush1.msra.mxu0 0.0
  %64 = vmatprep.subr.mxu0 0.0
  %65 = vmatpush1.msra.mxu0 0.0
  %66 = vmatprep.subr.mxu0 0.0
  %67 = vmatpush1.msra.mxu0 0.0
  %68 = vmatprep.subr.mxu0 0.0
  %69 = vmatpush1.msra.mxu0 %v28
  %70 = vmatprep.subr.mxu0 0.0
  %71 = vmatpush1.msra.mxu0 %v27
  %72 = vmatprep.subr.mxu0 0.0
  %73 = vmatpush2.msra.mxu0 0.0
  %74 = vmatprep.subr.mxu0 0.0
  %75 = vmatpush2.msra.mxu0 0.0
  %76 = vmatprep.subr.mxu0 0.0
  %77 = vmatpush2.msra.mxu0 0.0
  %78 = vmatprep.subr.mxu0 0.0
  %79 = vmatpush2.msra.mxu0 0.0
  %80 = vmatprep.subr.mxu0 0.0
  %81 = vmatpush2.msra.mxu0 0.0
  %82 = vmatprep.subr.mxu0 0.0
  %83 = vmatpush2.msra.mxu0 0.0
  %84 = vmatprep.subr.mxu0 0.0
  %85 = vmatpush2.msra.mxu0 0.0
  %86 = vmatprep.subr.mxu0 0.0
  %87 = vmatpush2.msra.mxu0 0.0
  %88 = vmatprep.subr.mxu0 0.0
  %89 = vmatpush2.msra.mxu0 0.0
  %90 = vmatprep.subr.mxu0 0.0
  %91 = vmatpush2.msra.mxu0 0.0
  %92 = vmatprep.subr.mxu0 0.0
  %93 = vmatpush2.msra.mxu0 0.0
  %94 = vmatprep.subr.mxu0 0.0
  %95 = vmatpush2.msra.mxu0 0.0
  %96 = vmatprep.subr.mxu0 0.0
  %97 = vmatpush2.msra.mxu0 0.0
  %98 = vmatprep.subr.mxu0 0.0
  %99 = vmatpush2.msra.mxu0 0.0
  %100 = vmatprep.subr.mxu0 0.0
  %101 = vmatpush2.msra.mxu0 0.0
  %102 = vmatprep.subr.mxu0 0.0
  %103 = vmatpush2.msra.mxu0 0.0
  %104 = vmatprep.mubr.f32.mxu0 0.0
  %105 = vmatmul.mubr.f32.gmra.mxu0 %v38
  %v106 = vpop.f32.mrf.mxu0
  %v107 = vadd.f32 %v34, %v106
  %v108 = vpop.f32.mrf.mxu0
  %109 = vdwg.mxu0
  %v110 = vmax.f32 %v107, 0.0
  %v111 = vld [vmem:[%s3] sm:$0xff]
  %v112 = vld [vmem:[%s3 + $0x8] sm:$0xff]
  %v113 = vld [vmem:[%s3 + $0x10] sm:$0xff]
  %v114 = vld [vmem:[%s3 + $0x18] sm:$0xff]
  %v115 = vld [vmem:[%s4] sm:$0x1]
  %v117 = vlaneseq
  %v118 = vshrl.u32 %v117, 7
  %v119 = vsub.s32 0, %v118
  %v120 = vrot.slane %v115, %v119
  %vm122 = vcmask 261120
  %v124 = vsel %vm122, %v110, 0
  %126 = vmatprep.subr.mxu0 0.0
  %127 = vmatpush1.msra.mxu0 0.0
  %128 = vmatprep.subr.mxu0 0.0
  %129 = vmatpush1.msra.mxu0 0.0
  %130 = vmatprep.subr.mxu0 0.0
  %131 = vmatpush1.msra.mxu0 0.0
  %132 = vmatprep.subr.mxu0 0.0
  %133 = vmatpush1.msra.mxu0 0.0
  %134 = vmatprep.subr.mxu0 0.0
  %135 = vmatpush1.msra.mxu0 0.0
  %136 = vmatprep.subr.mxu0 0.0
  %137 = vmatpush1.msra.mxu0 0.0
  %138 = vmatprep.subr.mxu0 0.0
  %139 = vmatpush1.msra.mxu0 0.0
  %140 = vmatprep.subr.mxu0 0.0
  %141 = vmatpush1.msra.mxu0 0.0
  %142 = vmatprep.subr.mxu0 0.0
  %143 = vmatpush1.msra.mxu0 0.0
  %144 = vmatprep.subr.mxu0 0.0
  %145 = vmatpush1.msra.mxu0 0.0
  %146 = vmatprep.subr.mxu0 0.0
  %147 = vmatpush1.msra.mxu0 0.0
  %148 = vmatprep.subr.mxu0 0.0
  %149 = vmatpush1.msra.mxu0 0.0
  %150 = vmatprep.subr.mxu0 0.0
  %151 = vmatpush1.msra.mxu0 %v114
  %152 = vmatprep.subr.mxu0 0.0
  %153 = vmatpush1.msra.mxu0 %v113
  %154 = vmatprep.subr.mxu0 0.0
  %155 = vmatpush1.msra.mxu0 %v112
  %156 = vmatprep.subr.mxu0 0.0
  %157 = vmatpush1.msra.mxu0 %v111
  %158 = vmatprep.subr.mxu0 0.0
  %159 = vmatpush2.msra.mxu0 0.0
  %160 = vmatprep.subr.mxu0 0.0
  %161 = vmatpush2.msra.mxu0 0.0
  %162 = vmatprep.subr.mxu0 0.0
  %163 = vmatpush2.msra.mxu0 0.0
  %164 = vmatprep.subr.mxu0 0.0
  %165 = vmatpush2.msra.mxu0 0.0
  %166 = vmatprep.subr.mxu0 0.0
  %167 = vmatpush2.msra.mxu0 0.0
  %168 = vmatprep.subr.mxu0 0.0
  %169 = vmatpush2.msra.mxu0 0.0
  %170 = vmatprep.subr.mxu0 0.0
  %171 = vmatpush2.msra.mxu0 0.0
  %172 = vmatprep.subr.mxu0 0.0
  %173 = vmatpush2.msra.mxu0 0.0
  %174 = vmatprep.subr.mxu0 0.0
  %175 = vmatpush2.msra.mxu0 0.0
  %176 = vmatprep.subr.mxu0 0.0
  %177 = vmatpush2.msra.mxu0 0.0
  %178 = vmatprep.subr.mxu0 0.0
  %179 = vmatpush2.msra.mxu0 0.0
  %180 = vmatprep.subr.mxu0 0.0
  %181 = vmatpush2.msra.mxu0 0.0
  %182 = vmatprep.subr.mxu0 0.0
  %183 = vmatpush2.msra.mxu0 0.0
  %184 = vmatprep.subr.mxu0 0.0
  %185 = vmatpush2.msra.mxu0 0.0
  %186 = vmatprep.subr.mxu0 0.0
  %187 = vmatpush2.msra.mxu0 0.0
  %188 = vmatprep.subr.mxu0 0.0
  %189 = vmatpush2.msra.mxu0 0.0
  %190 = vmatprep.mubr.f32.mxu0 0.0
  %191 = vmatmul.mubr.f32.gmra.mxu0 %v124
  %v192 = vpop.f32.mrf.mxu0
  %v193 = vadd.f32 %v120, %v192
  %v194 = vpop.f32.mrf.mxu0
  %195 = vdwg.mxu0
  %v196 = vmax.f32 %v193, 0.0
  %v197 = vld [vmem:[%s5] sm:$0xff]
  %v198 = vld [vmem:[%s5 + $0x8] sm:$0xff]
  %v199 = vld [vmem:[%s5 + $0x10] sm:$0xff]
  %v200 = vld [vmem:[%s5 + $0x18] sm:$0xff]
  %v201 = vld [vmem:[%s6] sm:$0x1]
  %v203 = vlaneseq
  %v204 = vshrl.u32 %v203, 7
  %v205 = vsub.s32 0, %v204
  %v206 = vrot.slane %v201, %v205
  %v209 = vsel %vm122, %v196, 0
  %211 = vmatprep.subr.mxu0 0.0
  %212 = vmatpush1.msra.mxu0 0.0
  %213 = vmatprep.subr.mxu0 0.0
  %214 = vmatpush1.msra.mxu0 0.0
  %215 = vmatprep.subr.mxu0 0.0
  %216 = vmatpush1.msra.mxu0 0.0
  %217 = vmatprep.subr.mxu0 0.0
  %218 = vmatpush1.msra.mxu0 0.0
  %219 = vmatprep.subr.mxu0 0.0
  %220 = vmatpush1.msra.mxu0 0.0
  %221 = vmatprep.subr.mxu0 0.0
  %222 = vmatpush1.msra.mxu0 0.0
  %223 = vmatprep.subr.mxu0 0.0
  %224 = vmatpush1.msra.mxu0 0.0
  %225 = vmatprep.subr.mxu0 0.0
  %226 = vmatpush1.msra.mxu0 0.0
  %227 = vmatprep.subr.mxu0 0.0
  %228 = vmatpush1.msra.mxu0 0.0
  %229 = vmatprep.subr.mxu0 0.0
  %230 = vmatpush1.msra.mxu0 0.0
  %231 = vmatprep.subr.mxu0 0.0
  %232 = vmatpush1.msra.mxu0 0.0
  %233 = vmatprep.subr.mxu0 0.0
  %234 = vmatpush1.msra.mxu0 0.0
  %235 = vmatprep.subr.mxu0 0.0
  %236 = vmatpush1.msra.mxu0 %v200
  %237 = vmatprep.subr.mxu0 0.0
  %238 = vmatpush1.msra.mxu0 %v199
  %239 = vmatprep.subr.mxu0 0.0
  %240 = vmatpush1.msra.mxu0 %v198
  %241 = vmatprep.subr.mxu0 0.0
  %242 = vmatpush1.msra.mxu0 %v197
  %243 = vmatprep.subr.mxu0 0.0
  %244 = vmatpush2.msra.mxu0 0.0
  %245 = vmatprep.subr.mxu0 0.0
  %246 = vmatpush2.msra.mxu0 0.0
  %247 = vmatprep.subr.mxu0 0.0
  %248 = vmatpush2.msra.mxu0 0.0
  %249 = vmatprep.subr.mxu0 0.0
  %250 = vmatpush2.msra.mxu0 0.0
  %251 = vmatprep.subr.mxu0 0.0
  %252 = vmatpush2.msra.mxu0 0.0
  %253 = vmatprep.subr.mxu0 0.0
  %254 = vmatpush2.msra.mxu0 0.0
  %255 = vmatprep.subr.mxu0 0.0
  %256 = vmatpush2.msra.mxu0 0.0
  %257 = vmatprep.subr.mxu0 0.0
  %258 = vmatpush2.msra.mxu0 0.0
  %259 = vmatprep.subr.mxu0 0.0
  %260 = vmatpush2.msra.mxu0 0.0
  %261 = vmatprep.subr.mxu0 0.0
  %262 = vmatpush2.msra.mxu0 0.0
  %263 = vmatprep.subr.mxu0 0.0
  %264 = vmatpush2.msra.mxu0 0.0
  %265 = vmatprep.subr.mxu0 0.0
  %266 = vmatpush2.msra.mxu0 0.0
  %267 = vmatprep.subr.mxu0 0.0
  %268 = vmatpush2.msra.mxu0 0.0
  %269 = vmatprep.subr.mxu0 0.0
  %270 = vmatpush2.msra.mxu0 0.0
  %271 = vmatprep.subr.mxu0 0.0
  %272 = vmatpush2.msra.mxu0 0.0
  %273 = vmatprep.subr.mxu0 0.0
  %274 = vmatpush2.msra.mxu0 0.0
  %275 = vmatprep.mubr.f32.mxu0 0.0
  %276 = vmatmul.mubr.f32.gmra.mxu0 %v209
  %v277 = vpop.f32.mrf.mxu0
  %v278 = vadd.f32 %v206, %v277
  %v279 = vpop.f32.mrf.mxu0
  %280 = vdwg.mxu0
  %v281 = vtanh.pop %v278
  %v282 = vmul.f32 %v281, 3.5
  %v283 = vsub.f32 %v282, 1.5
  %v284 = vlaneseq
  %v285 = vand.u32 %v284, 127
  %vm286 = vcmp.ge.s32.totalorder %v285, 4
  %v287 = vsel %vm286, %v283, %v278
  %vm288 = vcmask 58368
  %289 = vst.msk [vmem:[%s7] sm:$0x3] %vm288, %v287
  // Predicated region
  $region30: #{actor_forward.1} parent=0 // pred_check
    _
  $region31: #{actor_forward.1} parent=0 // pred_check_branch
    %291 = sbr.rel (0) target = $region33
  $region32: #{actor_forward.1} parent=0 // pred_region
    _
  $region33: #{actor_forward.1} parent=0 // pred_fallthru
    _
  // Predicated region
  $region34: #{actor_forward.1} parent=0 // pred_check
    _
  $region35: #{actor_forward.1} parent=0 // pred_check_branch
    %293 = sbr.rel (0) target = $region37
  $region36: #{actor_forward.1} parent=0 // pred_region
    _
  $region37: #{actor_forward.1} parent=0 // pred_fallthru
    _

</llo_original>
